<compile_context>
chip_gen: v6e
topology: v6e:2x2x1
jax: 0.10.0
libtpu: 0.0.40
codegen_flags: <defaults>
</compile_context>

<pallas_src>
import functools

import jax
import jax.numpy as jnp
import numpy as np
from jax import lax
from jax.experimental import pallas as pl
from jax.experimental.pallas import tpu as pltpu


def _round_up(n, m):
    return ((n + m - 1) // m) * m


# ---------------------------------------------------------------------------
# Pallas kernel: one batch element, BOTH branches (0 = student, 1 = teacher).
# ---------------------------------------------------------------------------
def _pair_branch_kernel(x_ref, w1_ref, b1_ref, wh_ref, bh_ref,
                        pred_ref, cls_ref, xpad_ref, patches_ref, *, W):
    cin_pad, hw = x_ref.shape[1], x_ref.shape[2]
    chid = wh_ref.shape[2]
    nc = wh_ref.shape[1] // 2
    padw = xpad_ref.shape[1]
    padl = (padw - hw) // 2                       # static, multiple of 128

    # Zero only the two lane-aligned pad stripes (1 vreg each); the interior
    # is fully overwritten below.  Per-step (not program_id==0 gated) because
    # under megacore "parallel" each core owns a private scratch buffer.
    xpad_ref[:, 0:padl] = jnp.zeros((cin_pad, padl), jnp.float32)
    xpad_ref[:, padl + hw:padw] = jnp.zeros((cin_pad, padw - padl - hw),
                                            jnp.float32)
    # Lane-aligned interior copy (padl % 128 == 0 -> unmasked stores).
    xpad_ref[:, padl:padl + hw] = x_ref[0]

    # Column-validity masks for the left/right taps; out-of-range rows read
    # the zero pad region so only the column condition needs masking.
    col = lax.broadcasted_iota(jnp.int32, (cin_pad, hw), 1)
    xcol = (col & (W - 1)) if (W & (W - 1)) == 0 else (col % W)
    mask_l = xcol > 0                              # valid when x-1 >= 0
    mask_r = xcol < (W - 1)                        # valid when x+1 <  W

    # im2col: each of the 9 taps is one whole-sublane block (Cin_pad % 8 == 0)
    # of the (9*Cin_pad, HW) patch matrix -> aligned vst, no sublane shuffles.
    t = 0
    for dy in range(3):
        for dx in range(3):
            shift = (dy - 1) * W + (dx - 1)
            tap = xpad_ref[:, padl + shift: padl + shift + hw]   # (Cin_pad, HW)
            if dx == 0:
                tap = jnp.where(mask_l, tap, 0.0)
            elif dx == 2:
                tap = jnp.where(mask_r, tap, 0.0)
            patches_ref[t * cin_pad:(t + 1) * cin_pad, :] = tap
            t += 1

    patches = patches_ref[...].astype(jnp.bfloat16)

    # Branch-stacked conv matmul: (2*Chid, 9*Cin_pad) @ (9*Cin_pad, HW),
    # bf16 MXU operands, f32 accumulate, f32 bias + ReLU epilogue.
    h_both = jnp.dot(w1_ref[...], patches, preferred_element_type=jnp.float32)
    h_both = jnp.maximum(h_both + b1_ref[...], 0.0)              # (2*Chid, HW)

    # Per-branch stacked head [w2; w3]: one (2*nc, Chid) @ (Chid, HW) matmul.
    # rows [:nc]  -> segmentation logits (lane-dense store)
    # rows [nc:]  -> classification logits, GAP over HW afterwards
    # (mean(w3 @ h + b3) == w3 @ mean(h) + b3, so the bias can be pre-added).
    for r in range(2):                             # 0 = student, 1 = teacher
        h_r = h_both[r * chid:(r + 1) * chid].astype(jnp.bfloat16)
        hd = jnp.dot(wh_ref[r], h_r,
                     preferred_element_type=jnp.float32) + bh_ref[r]
        pred_ref[r, 0] = hd[:nc]
        cls_ref[r, 0] = jnp.mean(hd[nc:], axis=1, keepdims=True)


# ---------------------------------------------------------------------------
# Wrapper: layout prep, BlockSpecs / grid, single fused pallas_call.
# ---------------------------------------------------------------------------
def _prep_pair(student, teacher):
    """Channel-major, branch-stacked, sublane-padded, bf16 weight layout."""
    kh, kw, cin, chid = student["w1"].shape
    nc = student["w2"].shape[1]
    cin_pad = _round_up(cin, 8)

    def conv_w(p):                                # (Chid, 9*Cin_pad)
        w = p["w1"].reshape(kh * kw, cin, chid)
        w = jnp.pad(w, ((0, 0), (0, cin_pad - cin), (0, 0)))
        return w.reshape(kh * kw * cin_pad, chid).T

    def head_w(p):                                # (2*nc, Chid) = [w2; w3]
        return jnp.concatenate([p["w2"].T, p["w3"].T], axis=0)

    def head_b(p):                                # (2*nc, 1) = [b2; b3]
        return jnp.concatenate([p["b2"].reshape(nc, 1),
                                p["b3"].reshape(nc, 1)], axis=0)

    w1b = jnp.concatenate([conv_w(student), conv_w(teacher)], axis=0)
    b1b = jnp.concatenate([student["b1"].reshape(chid, 1),
                           teacher["b1"].reshape(chid, 1)], axis=0)
    whead = jnp.stack([head_w(student), head_w(teacher)])
    bhead = jnp.stack([head_b(student), head_b(teacher)])
    return (w1b.astype(jnp.bfloat16), b1b.astype(jnp.float32),
            whead.astype(jnp.bfloat16), bhead.astype(jnp.float32),
            cin_pad, chid, nc)


@jax.jit
def mean_teacher_pair_forward(x_nchw, student, teacher):
    """Fused student+teacher forward. Returns (pred (2,B,nc,H,W), cls (2,B,nc))."""
    B, cin, H, W = x_nchw.shape
    hw = H * W
    w1b, b1b, whead, bhead, cin_pad, chid, nc = _prep_pair(student, teacher)

    # Documented preconditions for lane/sublane-dense layout (perf, not math).
    assert hw % 128 == 0, "H*W must be a multiple of 128 (lane-dense stores)"
    assert chid % 8 == 0 and nc % 8 == 0, "Chid and num_classes must be 8-aligned"

    padl = _round_up(W + 1, 128)                  # covers any W, lane-aligned
    padw = padl + hw + padl

    xf = x_nchw.reshape(B, cin, hw).astype(jnp.float32)       # free NCHW reshape
    xf = jnp.pad(xf, ((0, 0), (0, cin_pad - cin), (0, 0)))    # sublane-align Cin

    flops = B * (2 * (2 * chid) * (9 * cin_pad) * hw
                 + 2 * 2 * (2 * nc) * chid * hw)
    bytes_accessed = (4 * B * cin_pad * hw
                      + 2 * (w1b.size + whead.size)
                      + 4 * (b1b.size + bhead.size)
                      + 4 * 2 * B * nc * (hw + 1))

    pred_all, cls_all = pl.pallas_call(
        functools.partial(_pair_branch_kernel, W=W),
        grid=(B,),
        in_specs=[
            pl.BlockSpec((1, cin_pad, hw), lambda b: (b, 0, 0)),
            pl.BlockSpec((2 * chid, 9 * cin_pad), lambda b: (0, 0)),
            pl.BlockSpec((2 * chid, 1), lambda b: (0, 0)),
            pl.BlockSpec((2, 2 * nc, chid), lambda b: (0, 0, 0)),
            pl.BlockSpec((2, 2 * nc, 1), lambda b: (0, 0, 0)),
        ],
        out_specs=[
            pl.BlockSpec((2, 1, nc, hw), lambda b: (0, b, 0, 0)),
            pl.BlockSpec((2, 1, nc, 1), lambda b: (0, b, 0, 0)),
        ],
        out_shape=(
            jax.ShapeDtypeStruct((2, B, nc, hw), jnp.float32),
            jax.ShapeDtypeStruct((2, B, nc, 1), jnp.float32),
        ),
        scratch_shapes=[
            pltpu.VMEM((cin_pad, padw), jnp.float32),         # padded input
            pltpu.VMEM((9 * cin_pad, hw), jnp.float32),       # im2col patches
        ],
        compiler_params=pltpu.CompilerParams(
            dimension_semantics=("parallel",)),
        cost_estimate=pl.CostEstimate(flops=flops, transcendentals=0,
                                      bytes_accessed=bytes_accessed),
    )(xf, w1b, b1b, whead, bhead)

    pred_all = pred_all.reshape(2, B, nc, H, W)   # free trailing-dim reshape
    cls_all = cls_all[..., 0]                     # (2, B, nc)
    return pred_all, cls_all


# ---------------------------------------------------------------------------
# MeanTeacher_CPS: parameters + forward semantics.
# ---------------------------------------------------------------------------
def init_branch_params(key, cin, chid, nc):
    k1, k2, k3, k4, k5, k6 = jax.random.split(key, 6)
    return {
        "w1": 0.1 * jax.random.normal(k1, (3, 3, cin, chid), jnp.float32),
        "b1": 0.01 * jax.random.normal(k2, (1, chid), jnp.float32),
        "w2": 0.1 * jax.random.normal(k3, (chid, nc), jnp.float32),
        "b2": 0.01 * jax.random.normal(k4, (1, nc), jnp.float32),
        "w3": 0.1 * jax.random.normal(k5, (chid, nc), jnp.float32),
        "b3": 0.01 * jax.random.normal(k6, (1, nc), jnp.float32),
    }


def init_mean_teacher_cps(key, cin, chid, nc):
    k1, k2 = jax.random.split(key)
    branch1 = init_branch_params(k1, cin, chid, nc)
    branch2 = init_branch_params(k2, cin, chid, nc)
    # teacher params are exact copies of student params (as in __init__).
    teacher1 = jax.tree_util.tree_map(lambda a: a, branch1)
    teacher2 = jax.tree_util.tree_map(lambda a: a, branch2)
    return {"branch1": branch1, "branch2": branch2,
            "teacher_branch1": teacher1, "teacher_branch2": teacher2}


def mean_teacher_cps_forward(params, data, step=1):
    if step == 1:
        student, teacher = params["branch1"], params["teacher_branch1"]
    else:
        student, teacher = params["branch2"], params["teacher_branch2"]
    pred_all, cls_all = mean_teacher_pair_forward(data, student, teacher)
    s_pred = pred_all[0]
    t_pred = lax.stop_gradient(pred_all[1])       # teacher == torch.no_grad()
    s_class = cls_all[0]
    t_class = lax.stop_gradient(cls_all[1])
    return s_pred, t_pred, s_class, t_class


# TODO(synk): _update_ema_variables is a training-time parameter update, not
# part of the forward pass; it is left to a plain-JAX tree_map if needed.


# ---------------------------------------------------------------------------
# Pure-JAX f32 reference for the correctness check.
# ---------------------------------------------------------------------------
def branch_ref(x_nchw, p):
    x = jnp.transpose(x_nchw, (0, 2, 3, 1)).astype(jnp.float32)
    h = lax.conv_general_dilated(
        x, p["w1"], (1, 1), "SAME",
        dimension_numbers=("NHWC", "HWIO", "NHWC"),
        precision=lax.Precision.HIGHEST) + p["b1"][0]
    h = jnp.maximum(h, 0.0)
    pred = jnp.einsum("bhwc,cd->bhwd", h, p["w2"],
                      precision=lax.Precision.HIGHEST) + p["b2"][0]
    pooled = jnp.mean(h.reshape(x.shape[0], -1, h.shape[-1]), axis=1)
    cls = jnp.dot(pooled, p["w3"], precision=lax.Precision.HIGHEST) + p["b3"][0]
    return jnp.transpose(pred, (0, 3, 1, 2)), cls


if __name__ == "__main__":
    B, Cin, H, W = 2, 4, 16, 16
    Chid, NumClasses = 32, 8

    key = jax.random.PRNGKey(0)
    kx, kp = jax.random.split(key)
    x = jax.random.normal(kx, (B, Cin, H, W), jnp.float32)   # NCHW like PyTorch

    params = init_mean_teacher_cps(kp, Cin, Chid, NumClasses)

    s_pred, t_pred, s_class, t_class = mean_teacher_cps_forward(params, x, step=1)
    jax.block_until_ready((s_pred, t_pred, s_class, t_class))

    # Correctness: kernel (bf16 MXU operands, f32 accumulate) vs f32 reference.
    ref_pred, ref_class = branch_ref(x, params["branch1"])
    np.testing.assert_allclose(np.asarray(s_pred), np.asarray(ref_pred),
                               rtol=3e-2, atol=3e-2)
    np.testing.assert_allclose(np.asarray(s_class), np.asarray(ref_class),
                               rtol=3e-2, atol=3e-2)
    # Teacher weights are copies of student weights -> identical outputs.
    np.testing.assert_allclose(np.asarray(s_pred), np.asarray(t_pred),
                               rtol=1e-6, atol=1e-6)
    np.testing.assert_allclose(np.asarray(s_class), np.asarray(t_class),
                               rtol=1e-6, atol=1e-6)

    # Also exercise step=2 (branch2 / teacher_branch2).
    out2 = mean_teacher_cps_forward(params, x, step=2)
    jax.block_until_ready(out2)

    print("KERNEL_OK")
</pallas_src>

<mosaic_0001>
module attributes {stable_mosaic.version = 11 : i64} {
  func.func @_pair_branch_kernel(%arg0: i32, %arg1: memref<1x8x256xf32, #tpu.memory_space<vmem>>, %arg2: memref<64x72xbf16, #tpu.memory_space<vmem>>, %arg3: memref<64x1xf32, #tpu.memory_space<vmem>>, %arg4: memref<2x16x32xbf16, #tpu.memory_space<vmem>>, %arg5: memref<2x16x1xf32, #tpu.memory_space<vmem>>, %arg6: memref<2x1x8x256xf32, #tpu.memory_space<vmem>>, %arg7: memref<2x1x8x1xf32, #tpu.memory_space<vmem>>, %arg8: memref<8x512xf32, #tpu.memory_space<vmem>>, %arg9: memref<72x256xf32, #tpu.memory_space<vmem>>) attributes {dimension_semantics = [#tpu.dimension_semantics<parallel>], iteration_bounds = array<i64: 2>, scalar_prefetch = 0 : i64, scratch_operands = 2 : i64, tpu.core_type = #tpu.core_type<tc>, window_params = [{transform_indices = @transform_0, window_bounds = array<i64: 1, 8, 256>}, {pipeline_mode = #tpu.pipeline_mode<synchronous>, transform_indices = @transform_1, window_bounds = array<i64: 64, 72>}, {pipeline_mode = #tpu.pipeline_mode<synchronous>, transform_indices = @transform_2, window_bounds = array<i64: 64, 1>}, {pipeline_mode = #tpu.pipeline_mode<synchronous>, transform_indices = @transform_3, window_bounds = array<i64: 2, 16, 32>}, {pipeline_mode = #tpu.pipeline_mode<synchronous>, transform_indices = @transform_4, window_bounds = array<i64: 2, 16, 1>}, {transform_indices = @transform_5, window_bounds = array<i64: 2, 1, 8, 256>}, {transform_indices = @transform_6, window_bounds = array<i64: 2, 1, 8, 1>}]} {
    %cst = arith.constant 0.000000e+00 : f32
    %0 = vector.broadcast %cst : f32 to vector<8x128xf32>
    %c0 = arith.constant 0 : index
    %c0_0 = arith.constant 0 : index
    %1 = vector.load %arg8[%c0, %c0_0] : memref<8x512xf32, #tpu.memory_space<vmem>>, vector<8x128xf32>
    tpu.vector_store %arg8[%c0, %c0_0], %0 {strides = array<i32>} : memref<8x512xf32, #tpu.memory_space<vmem>>, vector<8x128xf32>,
    %cst_1 = arith.constant 0.000000e+00 : f32
    %2 = vector.broadcast %cst_1 : f32 to vector<8x128xf32>
    %c0_2 = arith.constant 0 : index
    %c384 = arith.constant 384 : index
    %3 = vector.load %arg8[%c0_2, %c384] : memref<8x512xf32, #tpu.memory_space<vmem>>, vector<8x128xf32>
    tpu.vector_store %arg8[%c0_2, %c384], %2 {strides = array<i32>} : memref<8x512xf32, #tpu.memory_space<vmem>>, vector<8x128xf32>,
    %c0_3 = arith.constant 0 : index
    %c0_4 = arith.constant 0 : index
    %c0_5 = arith.constant 0 : index
    %4 = vector.load %arg1[%c0_3, %c0_4, %c0_5] : memref<1x8x256xf32, #tpu.memory_space<vmem>>, vector<1x8x256xf32>
    %5 = vector.shape_cast %4 : vector<1x8x256xf32> to vector<8x256xf32>
    %c0_6 = arith.constant 0 : index
    %c128 = arith.constant 128 : index
    %6 = vector.load %arg8[%c0_6, %c128] : memref<8x512xf32, #tpu.memory_space<vmem>>, vector<8x256xf32>
    tpu.vector_store %arg8[%c0_6, %c128], %5 {strides = array<i32>} : memref<8x512xf32, #tpu.memory_space<vmem>>, vector<8x256xf32>,
    %7 = tpu.iota {dimensions = array<i32: 1>} : vector<8x256xi32>
    %c15_i32 = arith.constant 15 : i32
    %8 = vector.broadcast %c15_i32 : i32 to vector<8x256xi32>
    %9 = arith.andi %7, %8 : vector<8x256xi32>
    %c0_i32 = arith.constant 0 : i32
    %10 = vector.broadcast %c0_i32 : i32 to vector<8x256xi32>
    %11 = arith.cmpi sgt, %9, %10 : vector<8x256xi32>
    %c15_i32_7 = arith.constant 15 : i32
    %12 = vector.broadcast %c15_i32_7 : i32 to vector<8x256xi32>
    %13 = arith.cmpi slt, %9, %12 : vector<8x256xi32>
    %c0_8 = arith.constant 0 : index
    %c111 = arith.constant 111 : index
    %14 = vector.load %arg8[%c0_8, %c111] : memref<8x512xf32, #tpu.memory_space<vmem>>, vector<8x256xf32>
    %cst_9 = arith.constant 0.000000e+00 : f32
    %15 = vector.broadcast %cst_9 : f32 to vector<8x256xf32>
    %16 = arith.select %11, %14, %15 : vector<8x256xi1>, vector<8x256xf32>
    %c0_10 = arith.constant 0 : index
    %c0_11 = arith.constant 0 : index
    %17 = vector.load %arg9[%c0_10, %c0_11] : memref<72x256xf32, #tpu.memory_space<vmem>>, vector<8x256xf32>
    tpu.vector_store %arg9[%c0_10, %c0_11], %16 {strides = array<i32>} : memref<72x256xf32, #tpu.memory_space<vmem>>, vector<8x256xf32>,
    %c0_12 = arith.constant 0 : index
    %c112 = arith.constant 112 : index
    %18 = vector.load %arg8[%c0_12, %c112] : memref<8x512xf32, #tpu.memory_space<vmem>>, vector<8x256xf32>
    %c8 = arith.constant 8 : index
    %c0_13 = arith.constant 0 : index
    %19 = vector.load %arg9[%c8, %c0_13] : memref<72x256xf32, #tpu.memory_space<vmem>>, vector<8x256xf32>
    tpu.vector_store %arg9[%c8, %c0_13], %18 {strides = array<i32>} : memref<72x256xf32, #tpu.memory_space<vmem>>, vector<8x256xf32>,
    %c0_14 = arith.constant 0 : index
    %c113 = arith.constant 113 : index
    %20 = vector.load %arg8[%c0_14, %c113] : memref<8x512xf32, #tpu.memory_space<vmem>>, vector<8x256xf32>
    %cst_15 = arith.constant 0.000000e+00 : f32
    %21 = vector.broadcast %cst_15 : f32 to vector<8x256xf32>
    %22 = arith.select %13, %20, %21 : vector<8x256xi1>, vector<8x256xf32>
    %c16 = arith.constant 16 : index
    %c0_16 = arith.constant 0 : index
    %23 = vector.load %arg9[%c16, %c0_16] : memref<72x256xf32, #tpu.memory_space<vmem>>, vector<8x256xf32>
    tpu.vector_store %arg9[%c16, %c0_16], %22 {strides = array<i32>} : memref<72x256xf32, #tpu.memory_space<vmem>>, vector<8x256xf32>,
    %c0_17 = arith.constant 0 : index
    %c127 = arith.constant 127 : index
    %24 = vector.load %arg8[%c0_17, %c127] : memref<8x512xf32, #tpu.memory_space<vmem>>, vector<8x256xf32>
    %cst_18 = arith.constant 0.000000e+00 : f32
    %25 = vector.broadcast %cst_18 : f32 to vector<8x256xf32>
    %26 = arith.select %11, %24, %25 : vector<8x256xi1>, vector<8x256xf32>
    %c24 = arith.constant 24 : index
    %c0_19 = arith.constant 0 : index
    %27 = vector.load %arg9[%c24, %c0_19] : memref<72x256xf32, #tpu.memory_space<vmem>>, vector<8x256xf32>
    tpu.vector_store %arg9[%c24, %c0_19], %26 {strides = array<i32>} : memref<72x256xf32, #tpu.memory_space<vmem>>, vector<8x256xf32>,
    %c0_20 = arith.constant 0 : index
    %c128_21 = arith.constant 128 : index
    %28 = vector.load %arg8[%c0_20, %c128_21] : memref<8x512xf32, #tpu.memory_space<vmem>>, vector<8x256xf32>
    %c32 = arith.constant 32 : index
    %c0_22 = arith.constant 0 : index
    %29 = vector.load %arg9[%c32, %c0_22] : memref<72x256xf32, #tpu.memory_space<vmem>>, vector<8x256xf32>
    tpu.vector_store %arg9[%c32, %c0_22], %28 {strides = array<i32>} : memref<72x256xf32, #tpu.memory_space<vmem>>, vector<8x256xf32>,
    %c0_23 = arith.constant 0 : index
    %c129 = arith.constant 129 : index
    %30 = vector.load %arg8[%c0_23, %c129] : memref<8x512xf32, #tpu.memory_space<vmem>>, vector<8x256xf32>
    %cst_24 = arith.constant 0.000000e+00 : f32
    %31 = vector.broadcast %cst_24 : f32 to vector<8x256xf32>
    %32 = arith.select %13, %30, %31 : vector<8x256xi1>, vector<8x256xf32>
    %c40 = arith.constant 40 : index
    %c0_25 = arith.constant 0 : index
    %33 = vector.load %arg9[%c40, %c0_25] : memref<72x256xf32, #tpu.memory_space<vmem>>, vector<8x256xf32>
    tpu.vector_store %arg9[%c40, %c0_25], %32 {strides = array<i32>} : memref<72x256xf32, #tpu.memory_space<vmem>>, vector<8x256xf32>,
    %c0_26 = arith.constant 0 : index
    %c143 = arith.constant 143 : index
    %34 = vector.load %arg8[%c0_26, %c143] : memref<8x512xf32, #tpu.memory_space<vmem>>, vector<8x256xf32>
    %cst_27 = arith.constant 0.000000e+00 : f32
    %35 = vector.broadcast %cst_27 : f32 to vector<8x256xf32>
    %36 = arith.select %11, %34, %35 : vector<8x256xi1>, vector<8x256xf32>
    %c48 = arith.constant 48 : index
    %c0_28 = arith.constant 0 : index
    %37 = vector.load %arg9[%c48, %c0_28] : memref<72x256xf32, #tpu.memory_space<vmem>>, vector<8x256xf32>
    tpu.vector_store %arg9[%c48, %c0_28], %36 {strides = array<i32>} : memref<72x256xf32, #tpu.memory_space<vmem>>, vector<8x256xf32>,
    %c0_29 = arith.constant 0 : index
    %c144 = arith.constant 144 : index
    %38 = vector.load %arg8[%c0_29, %c144] : memref<8x512xf32, #tpu.memory_space<vmem>>, vector<8x256xf32>
    %c56 = arith.constant 56 : index
    %c0_30 = arith.constant 0 : index
    %39 = vector.load %arg9[%c56, %c0_30] : memref<72x256xf32, #tpu.memory_space<vmem>>, vector<8x256xf32>
    tpu.vector_store %arg9[%c56, %c0_30], %38 {strides = array<i32>} : memref<72x256xf32, #tpu.memory_space<vmem>>, vector<8x256xf32>,
    %c0_31 = arith.constant 0 : index
    %c145 = arith.constant 145 : index
    %40 = vector.load %arg8[%c0_31, %c145] : memref<8x512xf32, #tpu.memory_space<vmem>>, vector<8x256xf32>
    %cst_32 = arith.constant 0.000000e+00 : f32
    %41 = vector.broadcast %cst_32 : f32 to vector<8x256xf32>
    %42 = arith.select %13, %40, %41 : vector<8x256xi1>, vector<8x256xf32>
    %c64 = arith.constant 64 : index
    %c0_33 = arith.constant 0 : index
    %43 = vector.load %arg9[%c64, %c0_33] : memref<72x256xf32, #tpu.memory_space<vmem>>, vector<8x256xf32>
    tpu.vector_store %arg9[%c64, %c0_33], %42 {strides = array<i32>} : memref<72x256xf32, #tpu.memory_space<vmem>>, vector<8x256xf32>,
    %c0_34 = arith.constant 0 : index
    %c0_35 = arith.constant 0 : index
    %44 = vector.load %arg9[%c0_34, %c0_35] : memref<72x256xf32, #tpu.memory_space<vmem>>, vector<72x256xf32>
    %45 = arith.truncf %44 : vector<72x256xf32> to vector<72x256xbf16>
    %c0_36 = arith.constant 0 : index
    %c0_37 = arith.constant 0 : index
    %46 = vector.load %arg2[%c0_36, %c0_37] : memref<64x72xbf16, #tpu.memory_space<vmem>>, vector<64x72xbf16>
    %cst_38 = arith.constant dense<0.000000e+00> : vector<64x256xf32>
    %47 = tpu.matmul %46, %45, %cst_38 {dimension_numbers = #tpu.dot_dimension_numbers<[1], [0], [0], [1], [0, 0, 1, 1], [], []>} : vector<64x72xbf16>, vector<72x256xbf16>, vector<64x256xf32> -> vector<64x256xf32>
    %c0_39 = arith.constant 0 : index
    %c0_40 = arith.constant 0 : index
    %48 = vector.load %arg3[%c0_39, %c0_40] : memref<64x1xf32, #tpu.memory_space<vmem>>, vector<64x1xf32>
    %49 = vector.broadcast %48 : vector<64x1xf32> to vector<64x256xf32>
    %50 = arith.addf %47, %49 : vector<64x256xf32>
    %cst_41 = arith.constant 0.000000e+00 : f32
    %51 = vector.broadcast %cst_41 : f32 to vector<64x256xf32>
    %52 = arith.maximumf %50, %51 : vector<64x256xf32>
    %53 = vector.extract_strided_slice %52 {offsets = [0, 0], sizes = [32, 256], strides = [1, 1]} : vector<64x256xf32> to vector<32x256xf32>
    %54 = arith.truncf %53 : vector<32x256xf32> to vector<32x256xbf16>
    %c0_42 = arith.constant 0 : index
    %c0_43 = arith.constant 0 : index
    %c0_44 = arith.constant 0 : index
    %55 = vector.load %arg4[%c0_42, %c0_43, %c0_44] : memref<2x16x32xbf16, #tpu.memory_space<vmem>>, vector<1x16x32xbf16>
    %56 = vector.shape_cast %55 : vector<1x16x32xbf16> to vector<16x32xbf16>
    %cst_45 = arith.constant dense<0.000000e+00> : vector<16x256xf32>
    %57 = tpu.matmul %56, %54, %cst_45 {dimension_numbers = #tpu.dot_dimension_numbers<[1], [0], [0], [1], [0, 0, 1, 1], [], []>} : vector<16x32xbf16>, vector<32x256xbf16>, vector<16x256xf32> -> vector<16x256xf32>
    %c0_46 = arith.constant 0 : index
    %c0_47 = arith.constant 0 : index
    %c0_48 = arith.constant 0 : index
    %58 = vector.load %arg5[%c0_46, %c0_47, %c0_48] : memref<2x16x1xf32, #tpu.memory_space<vmem>>, vector<1x16x1xf32>
    %59 = vector.shape_cast %58 : vector<1x16x1xf32> to vector<16x1xf32>
    %60 = vector.broadcast %59 : vector<16x1xf32> to vector<16x256xf32>
    %61 = arith.addf %57, %60 : vector<16x256xf32>
    %62 = vector.extract_strided_slice %61 {offsets = [0, 0], sizes = [8, 256], strides = [1, 1]} : vector<16x256xf32> to vector<8x256xf32>
    %c0_49 = arith.constant 0 : index
    %c0_50 = arith.constant 0 : index
    %c0_51 = arith.constant 0 : index
    %c0_52 = arith.constant 0 : index
    %63 = vector.load %arg6[%c0_49, %c0_50, %c0_51, %c0_52] : memref<2x1x8x256xf32, #tpu.memory_space<vmem>>, vector<1x1x8x256xf32>
    %64 = vector.shape_cast %63 : vector<1x1x8x256xf32> to vector<8x256xf32>
    %65 = vector.shape_cast %62 : vector<8x256xf32> to vector<1x1x8x256xf32>
    tpu.vector_store %arg6[%c0_49, %c0_50, %c0_51, %c0_52], %65 {strides = array<i32>} : memref<2x1x8x256xf32, #tpu.memory_space<vmem>>, vector<1x1x8x256xf32>,
    %66 = vector.extract_strided_slice %61 {offsets = [8, 0], sizes = [8, 256], strides = [1, 1]} : vector<16x256xf32> to vector<8x256xf32>
    %cst_53 = arith.constant dense<0.000000e+00> : vector<8xf32>
    %67 = vector.multi_reduction <add>, %66, %cst_53 [1] : vector<8x256xf32> to vector<8xf32>
    %68 = vector.shape_cast %67 : vector<8xf32> to vector<8x1xf32>
    %cst_54 = arith.constant 2.560000e+02 : f32
    %69 = vector.broadcast %cst_54 : f32 to vector<8x1xf32>
    %70 = arith.divf %68, %69 : vector<8x1xf32>
    %c0_55 = arith.constant 0 : index
    %c0_56 = arith.constant 0 : index
    %c0_57 = arith.constant 0 : index
    %c0_58 = arith.constant 0 : index
    %71 = vector.load %arg7[%c0_55, %c0_56, %c0_57, %c0_58] : memref<2x1x8x1xf32, #tpu.memory_space<vmem>>, vector<1x1x8x1xf32>
    %72 = vector.shape_cast %71 : vector<1x1x8x1xf32> to vector<8x1xf32>
    %73 = vector.shape_cast %70 : vector<8x1xf32> to vector<1x1x8x1xf32>
    tpu.vector_store %arg7[%c0_55, %c0_56, %c0_57, %c0_58], %73 {strides = array<i32>} : memref<2x1x8x1xf32, #tpu.memory_space<vmem>>, vector<1x1x8x1xf32>,
    %74 = vector.extract_strided_slice %52 {offsets = [32, 0], sizes = [32, 256], strides = [1, 1]} : vector<64x256xf32> to vector<32x256xf32>
    %75 = arith.truncf %74 : vector<32x256xf32> to vector<32x256xbf16>
    %c1 = arith.constant 1 : index
    %c0_59 = arith.constant 0 : index
    %c0_60 = arith.constant 0 : index
    %76 = vector.load %arg4[%c1, %c0_59, %c0_60] : memref<2x16x32xbf16, #tpu.memory_space<vmem>>, vector<1x16x32xbf16>
    %77 = vector.shape_cast %76 : vector<1x16x32xbf16> to vector<16x32xbf16>
    %cst_61 = arith.constant dense<0.000000e+00> : vector<16x256xf32>
    %78 = tpu.matmul %77, %75, %cst_61 {dimension_numbers = #tpu.dot_dimension_numbers<[1], [0], [0], [1], [0, 0, 1, 1], [], []>} : vector<16x32xbf16>, vector<32x256xbf16>, vector<16x256xf32> -> vector<16x256xf32>
    %c1_62 = arith.constant 1 : index
    %c0_63 = arith.constant 0 : index
    %c0_64 = arith.constant 0 : index
    %79 = vector.load %arg5[%c1_62, %c0_63, %c0_64] : memref<2x16x1xf32, #tpu.memory_space<vmem>>, vector<1x16x1xf32>
    %80 = vector.shape_cast %79 : vector<1x16x1xf32> to vector<16x1xf32>
    %81 = vector.broadcast %80 : vector<16x1xf32> to vector<16x256xf32>
    %82 = arith.addf %78, %81 : vector<16x256xf32>
    %83 = vector.extract_strided_slice %82 {offsets = [0, 0], sizes = [8, 256], strides = [1, 1]} : vector<16x256xf32> to vector<8x256xf32>
    %c1_65 = arith.constant 1 : index
    %c0_66 = arith.constant 0 : index
    %c0_67 = arith.constant 0 : index
    %c0_68 = arith.constant 0 : index
    %84 = vector.load %arg6[%c1_65, %c0_66, %c0_67, %c0_68] : memref<2x1x8x256xf32, #tpu.memory_space<vmem>>, vector<1x1x8x256xf32>
    %85 = vector.shape_cast %84 : vector<1x1x8x256xf32> to vector<8x256xf32>
    %86 = vector.shape_cast %83 : vector<8x256xf32> to vector<1x1x8x256xf32>
    tpu.vector_store %arg6[%c1_65, %c0_66, %c0_67, %c0_68], %86 {strides = array<i32>} : memref<2x1x8x256xf32, #tpu.memory_space<vmem>>, vector<1x1x8x256xf32>,
    %87 = vector.extract_strided_slice %82 {offsets = [8, 0], sizes = [8, 256], strides = [1, 1]} : vector<16x256xf32> to vector<8x256xf32>
    %cst_69 = arith.constant dense<0.000000e+00> : vector<8xf32>
    %88 = vector.multi_reduction <add>, %87, %cst_69 [1] : vector<8x256xf32> to vector<8xf32>
    %89 = vector.shape_cast %88 : vector<8xf32> to vector<8x1xf32>
    %cst_70 = arith.constant 2.560000e+02 : f32
    %90 = vector.broadcast %cst_70 : f32 to vector<8x1xf32>
    %91 = arith.divf %89, %90 : vector<8x1xf32>
    %c1_71 = arith.constant 1 : index
    %c0_72 = arith.constant 0 : index
    %c0_73 = arith.constant 0 : index
    %c0_74 = arith.constant 0 : index
    %92 = vector.load %arg7[%c1_71, %c0_72, %c0_73, %c0_74] : memref<2x1x8x1xf32, #tpu.memory_space<vmem>>, vector<1x1x8x1xf32>
    %93 = vector.shape_cast %92 : vector<1x1x8x1xf32> to vector<8x1xf32>
    %94 = vector.shape_cast %91 : vector<8x1xf32> to vector<1x1x8x1xf32>
    tpu.vector_store %arg7[%c1_71, %c0_72, %c0_73, %c0_74], %94 {strides = array<i32>} : memref<2x1x8x1xf32, #tpu.memory_space<vmem>>, vector<1x1x8x1xf32>,
    return
  }
  func.func @transform_0(%arg0: i32) -> (i32, i32, i32) {
    %c0_i32 = arith.constant 0 : i32
    %c0_i32_0 = arith.constant 0 : i32
    %c0_i32_1 = arith.constant 0 : i32
    return %arg0, %c0_i32, %c0_i32_0 : i32, i32, i32
  }
  func.func @transform_1(%arg0: i32) -> (i32, i32) {
    %c0_i32 = arith.constant 0 : i32
    %c0_i32_0 = arith.constant 0 : i32
    %c0_i32_1 = arith.constant 0 : i32
    return %c0_i32, %c0_i32_0 : i32, i32
  }
  func.func @transform_2(%arg0: i32) -> (i32, i32) {
    %c0_i32 = arith.constant 0 : i32
    %c0_i32_0 = arith.constant 0 : i32
    %c0_i32_1 = arith.constant 0 : i32
    return %c0_i32, %c0_i32_0 : i32, i32
  }
  func.func @transform_3(%arg0: i32) -> (i32, i32, i32) {
    %c0_i32 = arith.constant 0 : i32
    %c0_i32_0 = arith.constant 0 : i32
    %c0_i32_1 = arith.constant 0 : i32
    %c0_i32_2 = arith.constant 0 : i32
    return %c0_i32, %c0_i32_0, %c0_i32_1 : i32, i32, i32
  }
  func.func @transform_4(%arg0: i32) -> (i32, i32, i32) {
    %c0_i32 = arith.constant 0 : i32
    %c0_i32_0 = arith.constant 0 : i32
    %c0_i32_1 = arith.constant 0 : i32
    %c0_i32_2 = arith.constant 0 : i32
    return %c0_i32, %c0_i32_0, %c0_i32_1 : i32, i32, i32
  }
  func.func @transform_5(%arg0: i32) -> (i32, i32, i32, i32) {
    %c0_i32 = arith.constant 0 : i32
    %c0_i32_0 = arith.constant 0 : i32
    %c0_i32_1 = arith.constant 0 : i32
    %c0_i32_2 = arith.constant 0 : i32
    return %c0_i32, %arg0, %c0_i32_0, %c0_i32_1 : i32, i32, i32, i32
  }
  func.func @transform_6(%arg0: i32) -> (i32, i32, i32, i32) {
    %c0_i32 = arith.constant 0 : i32
    %c0_i32_0 = arith.constant 0 : i32
    %c0_i32_1 = arith.constant 0 : i32
    %c0_i32_2 = arith.constant 0 : i32
    return %c0_i32, %arg0, %c0_i32_0, %c0_i32_1 : i32, i32, i32, i32
  }
}

</mosaic_0001>

<llo_original>
// kernel: mean_teacher_pair_forward.1
$region0: #{mean_teacher_pair_forward.1}
  #allocation0 [shape = 'u32[]', space=smem, size = 0x4, offset = 0x4, fixed_abs, tag = 'smem constant byte address 0x4 - core index']
  #allocation1 [shape = 'u32[144,128]{1,0:T(1,128)}', space=vmem, size = 0x12000, scoped, tag = 'internal scratch']
  #allocation2 [shape = 'f32[8,512]{1,0:T(8,128)}', space=vmem, size = 0x4000, scoped, tag = 'scratch operand']
  #allocation3 [shape = 'f32[72,256]{1,0:T(8,128)}', space=vmem, size = 0x12000, scoped, tag = 'scratch operand']
  %s0 = inlined_call_operand.vmem [shape: f32[2,8,256], index: 0, kind: input, shape index: {}]
  %s1 = inlined_call_operand.vmem [shape: bf16[64,72], index: 1, kind: input, shape index: {}]
  %s2 = inlined_call_operand.vmem [shape: f32[64,1], index: 2, kind: input, shape index: {}]
  %s3 = inlined_call_operand.vmem [shape: bf16[2,16,32], index: 3, kind: input, shape index: {}]
  %s4 = inlined_call_operand.vmem [shape: f32[2,16,1], index: 4, kind: input, shape index: {}]
  %s5 = inlined_call_operand.vmem [shape: f32[2,2,8,256], index: 5, kind: output, shape index: {0}]
  %s6 = inlined_call_operand.vmem [shape: f32[2,2,8,1], index: 6, kind: output, shape index: {1}]
  %7 = xla_tuple %s5, %s6
  %s8 = sld [smem:[#allocation0]]
  $region114: #{mean_teacher_pair_forward.1} parent=0
    _
  %s10 = ssub.s32 1, %s8
  %s11 = scalar_select 0, %s10, %s8
  $region1: #{mean_teacher_pair_forward.1} parent=0
    #allocation4 [shape = 'u8[32768]{0}', space=vmem, size = 0x8000, scoped, tag = 'output window, operand 0']
    #allocation5 [shape = 'u8[16384]{0}', space=vmem, size = 0x4000, scoped, tag = 'output window, operand 1']
    loop: start=0, step=1, limit=4
    $region2: #{mean_teacher_pair_forward.1} parent=1 // loop_pre_header
      _
    $region3: #{mean_teacher_pair_forward.1} parent=1 // loop_header
      %s13 = sphi 0, %s17
      %p14 = scmp.ge.s32.totalorder %s13, 4
      %s23 = sphi 0, %s25
      %s26 = sphi 0, %s23
      %s27 = sphi 0, %s26
      %s43 = sphi 0, %s27
      %s47 = sphi 0, %s47
      %s49 = sphi 0, %s47
      %s50 = sphi 0, %s49
      %s64 = sphi 0, %s50
      %s68 = sphi 0, %s68
      %s70 = sphi 0, %s68
      %s71 = sphi 0, %s70
      %s85 = sphi 0, %s71
      %s89 = sphi 0, %s89
      %s91 = sphi 0, %s89
      %s92 = sphi 0, %s91
      %s106 = sphi 0, %s92
      %s110 = sphi 0, %s110
      %s112 = sphi 0, %s110
      %s113 = sphi 0, %s112
      %s127 = sphi 0, %s113
      %s133 = sphi 0, %s135
      %s136 = sphi 0, %s133
      %s137 = sphi 0, %s136
      %s153 = sphi 0, %s137
      %s159 = sphi 0, %s161
      %s162 = sphi 0, %s159
      %s163 = sphi 0, %s162
      %s179 = sphi 0, %s163
    $region4: #{mean_teacher_pair_forward.1} parent=1 // loop_header_branch
      %16 = sbr.rel (%p14) target = $region8
    $region5: #{mean_teacher_pair_forward.1} parent=1 // loop_body
      %s18 = ssub.s32 %s13, 1
      %s19 = ssub.s32 %s13, 2
      %s20 = sadd.s32 %s13, 1
      %s21 = ssub.s32 %s13, %s20
      %p22 = scmp.eq.s32.totalorder %s21, 0
      %s24 = sadd.s32 %s23, 1
      %s25 = scalar_select %p22, %s23, %s24
      %p28 = pneg %p22
      %p29 = scmp.eq.s32.totalorder %s13, 1
      %p30 = por %p28, %p29
      %p31 = scmp.ne.s32.totalorder %s23, %s26
      %p32 = scmp.eq.s32.totalorder %s13, 0
      %p33 = por %p31, %p32
      %p34 = scmp.ne.s32.totalorder %s23, %s26
      %p35 = scmp.eq.s32.totalorder %s18, 1
      %p36 = por %p34, %p35
      %p37 = scmp.ne.s32.totalorder %s26, %s27
      %p38 = scmp.eq.s32.totalorder %s18, 0
      %p39 = por %p37, %p38
      %p40 = scmp.ne.s32.totalorder %s26, %s27
      %p41 = scmp.eq.s32.totalorder %s19, 1
      %p42 = por %p40, %p41
      %p44 = scmp.ne.s32.totalorder %s27, %s43
      %p45 = scmp.eq.s32.totalorder %s19, 0
      %p46 = por %p44, %p45
      %s48 = sadd.s32 %s47, 1
      %p51 = scmp.eq.s32.totalorder %s13, 1
      %p52 = scmp.ne.s32.totalorder %s47, %s49
      %p53 = scmp.eq.s32.totalorder %s13, 0
      %p54 = por %p52, %p53
      %p55 = scmp.ne.s32.totalorder %s47, %s49
      %p56 = scmp.eq.s32.totalorder %s18, 1
      %p57 = por %p55, %p56
      %p58 = scmp.ne.s32.totalorder %s49, %s50
      %p59 = scmp.eq.s32.totalorder %s18, 0
      %p60 = por %p58, %p59
      %p61 = scmp.ne.s32.totalorder %s49, %s50
      %p62 = scmp.eq.s32.totalorder %s19, 1
      %p63 = por %p61, %p62
      %p65 = scmp.ne.s32.totalorder %s50, %s64
      %p66 = scmp.eq.s32.totalorder %s19, 0
      %p67 = por %p65, %p66
      %s69 = sadd.s32 %s68, 1
      %p72 = scmp.eq.s32.totalorder %s13, 1
      %p73 = scmp.ne.s32.totalorder %s68, %s70
      %p74 = scmp.eq.s32.totalorder %s13, 0
      %p75 = por %p73, %p74
      %p76 = scmp.ne.s32.totalorder %s68, %s70
      %p77 = scmp.eq.s32.totalorder %s18, 1
      %p78 = por %p76, %p77
      %p79 = scmp.ne.s32.totalorder %s70, %s71
      %p80 = scmp.eq.s32.totalorder %s18, 0
      %p81 = por %p79, %p80
      %p82 = scmp.ne.s32.totalorder %s70, %s71
      %p83 = scmp.eq.s32.totalorder %s19, 1
      %p84 = por %p82, %p83
      %p86 = scmp.ne.s32.totalorder %s71, %s85
      %p87 = scmp.eq.s32.totalorder %s19, 0
      %p88 = por %p86, %p87
      %s90 = sadd.s32 %s89, 1
      %p93 = scmp.eq.s32.totalorder %s13, 1
      %p94 = scmp.ne.s32.totalorder %s89, %s91
      %p95 = scmp.eq.s32.totalorder %s13, 0
      %p96 = por %p94, %p95
      %p97 = scmp.ne.s32.totalorder %s89, %s91
      %p98 = scmp.eq.s32.totalorder %s18, 1
      %p99 = por %p97, %p98
      %p100 = scmp.ne.s32.totalorder %s91, %s92
      %p101 = scmp.eq.s32.totalorder %s18, 0
      %p102 = por %p100, %p101
      %p103 = scmp.ne.s32.totalorder %s91, %s92
      %p104 = scmp.eq.s32.totalorder %s19, 1
      %p105 = por %p103, %p104
      %p107 = scmp.ne.s32.totalorder %s92, %s106
      %p108 = scmp.eq.s32.totalorder %s19, 0
      %p109 = por %p107, %p108
      %s111 = sadd.s32 %s110, 1
      %p114 = scmp.eq.s32.totalorder %s13, 1
      %p115 = scmp.ne.s32.totalorder %s110, %s112
      %p116 = scmp.eq.s32.totalorder %s13, 0
      %p117 = por %p115, %p116
      %p118 = scmp.ne.s32.totalorder %s110, %s112
      %p119 = scmp.eq.s32.totalorder %s18, 1
      %p120 = por %p118, %p119
      %p121 = scmp.ne.s32.totalorder %s112, %s113
      %p122 = scmp.eq.s32.totalorder %s18, 0
      %p123 = por %p121, %p122
      %p124 = scmp.ne.s32.totalorder %s112, %s113
      %p125 = scmp.eq.s32.totalorder %s19, 1
      %p126 = por %p124, %p125
      %p128 = scmp.ne.s32.totalorder %s113, %s127
      %p129 = scmp.eq.s32.totalorder %s19, 0
      %p130 = por %p128, %p129
      %s131 = ssub.s32 %s13, %s20
      %p132 = scmp.eq.s32.totalorder %s131, 0
      %s134 = sadd.s32 %s133, 1
      %s135 = scalar_select %p132, %s133, %s134
      %p138 = pneg %p132
      %p139 = scmp.eq.s32.totalorder %s13, 1
      %p140 = por %p138, %p139
      %p141 = scmp.ne.s32.totalorder %s133, %s136
      %p142 = scmp.eq.s32.totalorder %s13, 0
      %p143 = por %p141, %p142
      %p144 = scmp.ne.s32.totalorder %s133, %s136
      %p145 = scmp.eq.s32.totalorder %s18, 1
      %p146 = por %p144, %p145
      %p147 = scmp.ne.s32.totalorder %s136, %s137
      %p148 = scmp.eq.s32.totalorder %s18, 0
      %p149 = por %p147, %p148
      %p150 = scmp.ne.s32.totalorder %s136, %s137
      %p151 = scmp.eq.s32.totalorder %s19, 1
      %p152 = por %p150, %p151
      %p154 = scmp.ne.s32.totalorder %s137, %s153
      %p155 = scmp.eq.s32.totalorder %s19, 0
      %p156 = por %p154, %p155
      %s157 = ssub.s32 %s13, %s20
      %p158 = scmp.eq.s32.totalorder %s157, 0
      %s160 = sadd.s32 %s159, 1
      %s161 = scalar_select %p158, %s159, %s160
      %p164 = pneg %p158
      %p165 = scmp.eq.s32.totalorder %s13, 1
      %p166 = por %p164, %p165
      %p167 = scmp.ne.s32.totalorder %s159, %s162
      %p168 = scmp.eq.s32.totalorder %s13, 0
      %p169 = por %p167, %p168
      %p170 = scmp.ne.s32.totalorder %s159, %s162
      %p171 = scmp.eq.s32.totalorder %s18, 1
      %p172 = por %p170, %p171
      %p173 = scmp.ne.s32.totalorder %s162, %s163
      %p174 = scmp.eq.s32.totalorder %s18, 0
      %p175 = por %p173, %p174
      %p176 = scmp.ne.s32.totalorder %s162, %s163
      %p177 = scmp.eq.s32.totalorder %s19, 1
      %p178 = por %p176, %p177
      %p180 = scmp.ne.s32.totalorder %s163, %s179
      %p181 = scmp.eq.s32.totalorder %s19, 0
      %p182 = por %p180, %p181
      %p183 = scmp.le.s32.totalorder 1, %s13
      %p184 = scmp.lt.s32.totalorder %s13, 3
      %p185 = pnand %p183, %p184
      %p186 = pneg %p185
      // Predicated region
      $region9: #{mean_teacher_pair_forward.1} parent=5 // pred_check
        _
      $region10: #{mean_teacher_pair_forward.1} parent=5 // pred_check_branch
        %188 = sbr.rel (%p185) target = $region12
      $region11: #{mean_teacher_pair_forward.1} parent=5 // pred_region
        %s189 = ssub.s32 %s13, 1
        // Predicated region
        $region13: #{mean_teacher_pair_forward.1} parent=11 // pred_check
          %p190 = pneg %p60
        $region14: #{mean_teacher_pair_forward.1} parent=11 // pred_check_branch
          %192 = sbr.rel (%p190) target = $region16
        $region15: #{mean_teacher_pair_forward.1} parent=11 // pred_region
          _
        $region16: #{mean_teacher_pair_forward.1} parent=11 // pred_fallthru
          _
        // Predicated region
        $region17: #{mean_teacher_pair_forward.1} parent=11 // pred_check
          %p193 = pneg %p81
        $region18: #{mean_teacher_pair_forward.1} parent=11 // pred_check_branch
          %195 = sbr.rel (%p193) target = $region20
        $region19: #{mean_teacher_pair_forward.1} parent=11 // pred_region
          _
        $region20: #{mean_teacher_pair_forward.1} parent=11 // pred_fallthru
          _
        // Predicated region
        $region21: #{mean_teacher_pair_forward.1} parent=11 // pred_check
          %p196 = pneg %p102
        $region22: #{mean_teacher_pair_forward.1} parent=11 // pred_check_branch
          %198 = sbr.rel (%p196) target = $region24
        $region23: #{mean_teacher_pair_forward.1} parent=11 // pred_region
          _
        $region24: #{mean_teacher_pair_forward.1} parent=11 // pred_fallthru
          _
        // Predicated region
        $region25: #{mean_teacher_pair_forward.1} parent=11 // pred_check
          %p199 = pneg %p123
        $region26: #{mean_teacher_pair_forward.1} parent=11 // pred_check_branch
          %201 = sbr.rel (%p199) target = $region28
        $region27: #{mean_teacher_pair_forward.1} parent=11 // pred_region
          _
        $region28: #{mean_teacher_pair_forward.1} parent=11 // pred_fallthru
          _
      $region12: #{mean_teacher_pair_forward.1} parent=5 // pred_fallthru
        _
      %p202 = scmp.lt.s32.totalorder %s13, 2
      // Predicated region
      $region29: #{mean_teacher_pair_forward.1} parent=5 // pred_check
        %p203 = pneg %p202
      $region30: #{mean_teacher_pair_forward.1} parent=5 // pred_check_branch
        %205 = sbr.rel (%p203) target = $region32
      $region31: #{mean_teacher_pair_forward.1} parent=5 // pred_region
        // Predicated region
        $region33: #{mean_teacher_pair_forward.1} parent=31 // pred_check
          %p206 = pneg %p33
        $region34: #{mean_teacher_pair_forward.1} parent=31 // pred_check_branch
          %208 = sbr.rel (%p206) target = $region36
        $region35: #{mean_teacher_pair_forward.1} parent=31 // pred_region
          %p209 = scmp.lt.s32.totalorder %s13, 1
          %s210 = scalar_select %p209, %s13, 1
          %s211 = smul.addr %s210, 2
          %s212 = smul.addr %s211, 8
          %s213 = scalar_lea.vmem %s0, %s212
        $region36: #{mean_teacher_pair_forward.1} parent=31 // pred_fallthru
          _
      $region32: #{mean_teacher_pair_forward.1} parent=5 // pred_fallthru
        _
      %p214 = scmp.le.s32.totalorder 1, %s13
      %p215 = scmp.lt.s32.totalorder %s13, 3
      %p216 = pnand %p214, %p215
      %p217 = pneg %p216
      // Predicated region
      $region37: #{mean_teacher_pair_forward.1} parent=5 // pred_check
        _
      $region38: #{mean_teacher_pair_forward.1} parent=5 // pred_check_branch
        %219 = sbr.rel (%p216) target = $region40
      $region39: #{mean_teacher_pair_forward.1} parent=5 // pred_region
        %s220 = ssub.s32 %s13, 1
        %p221 = scmp.lt.s32.totalorder %s18, 1
        %s222 = scalar_select %p221, %s18, 1
        %s223 = smul.addr %s222, 2
        %s224 = smul.addr %s223, 8
        %s225 = scalar_lea.vmem %s0, %s224
        %p226 = pneg %p39
        %p227 = pneg %p36
        %p228 = pneg %p60
        %p229 = pneg %p57
        %p230 = pneg %p81
        %p231 = pneg %p78
        %p232 = pneg %p102
        %p233 = pneg %p99
        %p234 = pneg %p123
        %p235 = pneg %p120
        %p236 = pneg %p149
        %p237 = pneg %p146
        %s238 = sand.u32 %s136, 1
        %s239 = sand.u32 %s136, 1
        %s240 = smul.addr %s239, 32
        %s241 = scalar_lea.vmem [#allocation4], %s240
        %p242 = pneg %p175
        %p243 = pneg %p172
        %s244 = sand.u32 %s162, 1
        %s245 = sand.u32 %s162, 1
        %s246 = smul.addr %s245, 16
        %s247 = scalar_lea.vmem [#allocation5], %s246
        %p248 = scmp.lt.s32.totalorder %s18, 1
        %s249 = scalar_select %p248, %s18, 1
        %s250 = smul.addr %s249, 2
        %s251 = smul.addr %s250, 8
        %s252 = scalar_lea.vmem %s0, %s251
        %254 = vst [vmem:[#allocation2] sm:$0xff] 0.0
        %255 = vst [vmem:[#allocation2 + $0x18] sm:$0xff] 0.0
        %v256 = vld [vmem:[%s252] sm:$0xff]
        %v257 = vld [vmem:[%s252 + $0x8] sm:$0xff]
        %258 = vst [vmem:[#allocation2 + $0x8] sm:$0xff] %v256
        %259 = vst [vmem:[#allocation2 + $0x10] sm:$0xff] %v257
        %v260 = vlaneseq
        %v261 = vand.u32 %v260, 127
        %v262 = vadd.s32 %v261, 128
        %v263 = vand.u32 %v261, 15
        %v264 = vand.u32 %v262, 15
        %vm265 = vcmp.gt.s32.totalorder %v263, 0
        %vm266 = vcmp.gt.s32.totalorder %v264, 0
        %vm267 = vcmp.lt.s32.totalorder %v263, 15
        %vm268 = vcmp.lt.s32.totalorder %v264, 15
        %v269 = vld [vmem:[#allocation2] sm:$0xff]
        %v270 = vld [vmem:[#allocation2 + $0x8] sm:$0xff]
        %v271 = vld [vmem:[#allocation2 + $0x10] sm:$0xff]
        %275 = vrot.lane.b32.xlu0 %v269, 17
        %v276 = vpop.permute.xlu0 %275
        %277 = vrot.lane.b32.xlu0 %v270, 17
        %v278 = vpop.permute.xlu0 %277
        %279 = vrot.lane.b32.xlu0 %v271, 17
        %v280 = vpop.permute.xlu0 %279
        %vm281 = vcmask 138240
        %v282 = vsel %vm281, %v276, %v278
        %v283 = vsel %vm281, %v278, %v280
        %v286 = vsel %vm265, %v282, 0.0
        %v287 = vsel %vm266, %v283, 0.0
        %288 = vst [vmem:[#allocation3] sm:$0xff] %v286
        %289 = vst [vmem:[#allocation3 + $0x8] sm:$0xff] %v287
        %v290 = vld [vmem:[#allocation2] sm:$0xff]
        %v291 = vld [vmem:[#allocation2 + $0x8] sm:$0xff]
        %v292 = vld [vmem:[#allocation2 + $0x10] sm:$0xff]
        %296 = vrot.lane.b32.xlu0 %v290, 16
        %v297 = vpop.permute.xlu0 %296
        %298 = vrot.lane.b32.xlu0 %v291, 16
        %v299 = vpop.permute.xlu0 %298
        %300 = vrot.lane.b32.xlu0 %v292, 16
        %v301 = vpop.permute.xlu0 %300
        %vm302 = vcmask 130048
        %v303 = vsel %vm302, %v297, %v299
        %v304 = vsel %vm302, %v299, %v301
        %307 = vst [vmem:[#allocation3 + $0x10] sm:$0xff] %v303
        %308 = vst [vmem:[#allocation3 + $0x18] sm:$0xff] %v304
        %v309 = vld [vmem:[#allocation2] sm:$0xff]
        %v310 = vld [vmem:[#allocation2 + $0x8] sm:$0xff]
        %v311 = vld [vmem:[#allocation2 + $0x10] sm:$0xff]
        %315 = vrot.lane.b32.xlu0 %v309, 15
        %v316 = vpop.permute.xlu0 %315
        %317 = vrot.lane.b32.xlu0 %v310, 15
        %v318 = vpop.permute.xlu0 %317
        %319 = vrot.lane.b32.xlu0 %v311, 15
        %v320 = vpop.permute.xlu0 %319
        %vm321 = vcmask 121856
        %v322 = vsel %vm321, %v316, %v318
        %v323 = vsel %vm321, %v318, %v320
        %v326 = vsel %vm267, %v322, 0.0
        %v327 = vsel %vm268, %v323, 0.0
        %328 = vst [vmem:[#allocation3 + $0x20] sm:$0xff] %v326
        %329 = vst [vmem:[#allocation3 + $0x28] sm:$0xff] %v327
        %v330 = vld [vmem:[#allocation2] sm:$0xff]
        %v331 = vld [vmem:[#allocation2 + $0x8] sm:$0xff]
        %v332 = vld [vmem:[#allocation2 + $0x10] sm:$0xff]
        %336 = vrot.lane.b32.xlu0 %v330, 1
        %v337 = vpop.permute.xlu0 %336
        %338 = vrot.lane.b32.xlu0 %v331, 1
        %v339 = vpop.permute.xlu0 %338
        %340 = vrot.lane.b32.xlu0 %v332, 1
        %v341 = vpop.permute.xlu0 %340
        %vm342 = vcmask 7168
        %v343 = vsel %vm342, %v337, %v339
        %v344 = vsel %vm342, %v339, %v341
        %v347 = vsel %vm265, %v343, 0.0
        %v348 = vsel %vm266, %v344, 0.0
        %349 = vst [vmem:[#allocation3 + $0x30] sm:$0xff] %v347
        %350 = vst [vmem:[#allocation3 + $0x38] sm:$0xff] %v348
        %v351 = vld [vmem:[#allocation2 + $0x8] sm:$0xff]
        %v352 = vld [vmem:[#allocation2 + $0x10] sm:$0xff]
        %353 = vst [vmem:[#allocation3 + $0x40] sm:$0xff] %v351
        %354 = vst [vmem:[#allocation3 + $0x48] sm:$0xff] %v352
        %v355 = vld [vmem:[#allocation2 + $0x8] sm:$0xff]
        %v356 = vld [vmem:[#allocation2 + $0x10] sm:$0xff]
        %v357 = vld [vmem:[#allocation2 + $0x18] sm:$0xff]
        %361 = vrot.lane.b32.xlu0 %v355, 127
        %v362 = vpop.permute.xlu0 %361
        %363 = vrot.lane.b32.xlu0 %v356, 127
        %v364 = vpop.permute.xlu0 %363
        %365 = vrot.lane.b32.xlu0 %v357, 127
        %v366 = vpop.permute.xlu0 %365
        %vm367 = vcmask 1039360
        %v368 = vsel %vm367, %v362, %v364
        %v369 = vsel %vm367, %v364, %v366
        %v372 = vsel %vm267, %v368, 0.0
        %v373 = vsel %vm268, %v369, 0.0
        %374 = vst [vmem:[#allocation3 + $0x50] sm:$0xff] %v372
        %375 = vst [vmem:[#allocation3 + $0x58] sm:$0xff] %v373
        %v376 = vld [vmem:[#allocation2 + $0x8] sm:$0xff]
        %v377 = vld [vmem:[#allocation2 + $0x10] sm:$0xff]
        %v378 = vld [vmem:[#allocation2 + $0x18] sm:$0xff]
        %382 = vrot.lane.b32.xlu0 %v376, 113
        %v383 = vpop.permute.xlu0 %382
        %384 = vrot.lane.b32.xlu0 %v377, 113
        %v385 = vpop.permute.xlu0 %384
        %386 = vrot.lane.b32.xlu0 %v378, 113
        %v387 = vpop.permute.xlu0 %386
        %vm388 = vcmask 924672
        %v389 = vsel %vm388, %v383, %v385
        %v390 = vsel %vm388, %v385, %v387
        %v393 = vsel %vm265, %v389, 0.0
        %v394 = vsel %vm266, %v390, 0.0
        %395 = vst [vmem:[#allocation3 + $0x60] sm:$0xff] %v393
        %396 = vst [vmem:[#allocation3 + $0x68] sm:$0xff] %v394
        %v397 = vld [vmem:[#allocation2 + $0x8] sm:$0xff]
        %v398 = vld [vmem:[#allocation2 + $0x10] sm:$0xff]
        %v399 = vld [vmem:[#allocation2 + $0x18] sm:$0xff]
        %403 = vrot.lane.b32.xlu0 %v397, 112
        %v404 = vpop.permute.xlu0 %403
        %405 = vrot.lane.b32.xlu0 %v398, 112
        %v406 = vpop.permute.xlu0 %405
        %407 = vrot.lane.b32.xlu0 %v399, 112
        %v408 = vpop.permute.xlu0 %407
        %vm409 = vcmask 916480
        %v410 = vsel %vm409, %v404, %v406
        %v411 = vsel %vm409, %v406, %v408
        %414 = vst [vmem:[#allocation3 + $0x70] sm:$0xff] %v410
        %415 = vst [vmem:[#allocation3 + $0x78] sm:$0xff] %v411
        %v416 = vld [vmem:[#allocation2 + $0x8] sm:$0xff]
        %v417 = vld [vmem:[#allocation2 + $0x10] sm:$0xff]
        %v418 = vld [vmem:[#allocation2 + $0x18] sm:$0xff]
        %422 = vrot.lane.b32.xlu0 %v416, 111
        %v423 = vpop.permute.xlu0 %422
        %424 = vrot.lane.b32.xlu0 %v417, 111
        %v425 = vpop.permute.xlu0 %424
        %426 = vrot.lane.b32.xlu0 %v418, 111
        %v427 = vpop.permute.xlu0 %426
        %vm428 = vcmask 908288
        %v429 = vsel %vm428, %v423, %v425
        %v430 = vsel %vm428, %v425, %v427
        %v433 = vsel %vm267, %v429, 0.0
        %v434 = vsel %vm268, %v430, 0.0
        %435 = vst [vmem:[#allocation3 + $0x80] sm:$0xff] %v433
        %436 = vst [vmem:[#allocation3 + $0x88] sm:$0xff] %v434
        %v437 = vld [vmem:[#allocation3] sm:$0xff]
        %v438 = vld [vmem:[#allocation3 + $0x8] sm:$0xff]
        %v439 = vld [vmem:[#allocation3 + $0x10] sm:$0xff]
        %v440 = vld [vmem:[#allocation3 + $0x18] sm:$0xff]
        %v441 = vld [vmem:[#allocation3 + $0x20] sm:$0xff]
        %v442 = vld [vmem:[#allocation3 + $0x28] sm:$0xff]
        %v443 = vld [vmem:[#allocation3 + $0x30] sm:$0xff]
        %v444 = vld [vmem:[#allocation3 + $0x38] sm:$0xff]
        %v445 = vld [vmem:[#allocation3 + $0x40] sm:$0xff]
        %v446 = vld [vmem:[#allocation3 + $0x48] sm:$0xff]
        %v447 = vld [vmem:[#allocation3 + $0x50] sm:$0xff]
        %v448 = vld [vmem:[#allocation3 + $0x58] sm:$0xff]
        %v449 = vld [vmem:[#allocation3 + $0x60] sm:$0xff]
        %v450 = vld [vmem:[#allocation3 + $0x68] sm:$0xff]
        %v451 = vld [vmem:[#allocation3 + $0x70] sm:$0xff]
        %v452 = vld [vmem:[#allocation3 + $0x78] sm:$0xff]
        %v453 = vld [vmem:[#allocation3 + $0x80] sm:$0xff]
        %v454 = vld [vmem:[#allocation3 + $0x88] sm:$0xff]
        %v455 = vpack.c.bf16 %v439, %v437
        %v456 = vpack.c.bf16 %v440, %v438
        %v457 = vpack.c.bf16 %v443, %v441
        %v458 = vpack.c.bf16 %v444, %v442
        %v459 = vpack.c.bf16 %v447, %v445
        %v460 = vpack.c.bf16 %v448, %v446
        %v461 = vpack.c.bf16 %v451, %v449
        %v462 = vpack.c.bf16 %v452, %v450
        %v463 = vpack.c.bf16 %v453, %v453
        %v464 = vpack.c.bf16 %v454, %v454
        %v465 = vld [vmem:[%s1] sm:$0xf]
        %v466 = vld [vmem:[%s1 + $0x4] sm:$0xf]
        %v467 = vld [vmem:[%s1 + $0x8] sm:$0xf]
        %v468 = vld [vmem:[%s1 + $0xc] sm:$0xf]
        %v469 = vld [vmem:[%s1 + $0x10] sm:$0xf]
        %v470 = vld [vmem:[%s1 + $0x14] sm:$0xf]
        %v471 = vld [vmem:[%s1 + $0x18] sm:$0xf]
        %v472 = vld [vmem:[%s1 + $0x1c] sm:$0xf]
        %v473 = vld [vmem:[%s2] sm:$0xff]
        %v474 = vld [vmem:[%s2 + $0x8] sm:$0xff]
        %v475 = vld [vmem:[%s2 + $0x10] sm:$0xff]
        %v476 = vld [vmem:[%s2 + $0x18] sm:$0xff]
        %v477 = vld [vmem:[%s2 + $0x20] sm:$0xff]
        %v478 = vld [vmem:[%s2 + $0x28] sm:$0xff]
        %v479 = vld [vmem:[%s2 + $0x30] sm:$0xff]
        %v480 = vld [vmem:[%s2 + $0x38] sm:$0xff]
        %482 = vset.pattern.permute.xlu0 0
        %483 = vperm.xlu0 %482, %v473
        %v484 = vpop.permute.xlu0 %483
        %487 = vset.pattern.permute.xlu0 0
        %488 = vperm.xlu0 %487, %v474
        %v489 = vpop.permute.xlu0 %488
        %492 = vset.pattern.permute.xlu0 0
        %493 = vperm.xlu0 %492, %v475
        %v494 = vpop.permute.xlu0 %493
        %497 = vset.pattern.permute.xlu0 0
        %498 = vperm.xlu0 %497, %v476
        %v499 = vpop.permute.xlu0 %498
        %502 = vset.pattern.permute.xlu0 0
        %503 = vperm.xlu0 %502, %v477
        %v504 = vpop.permute.xlu0 %503
        %507 = vset.pattern.permute.xlu0 0
        %508 = vperm.xlu0 %507, %v478
        %v509 = vpop.permute.xlu0 %508
        %512 = vset.pattern.permute.xlu0 0
        %513 = vperm.xlu0 %512, %v479
        %v514 = vpop.permute.xlu0 %513
        %517 = vset.pattern.permute.xlu0 0
        %518 = vperm.xlu0 %517, %v480
        %v519 = vpop.permute.xlu0 %518
        %v529 = vunpack.c.l.b16 %v465
        %v530 = vunpack.c.l.b16 %v466
        %v531 = vunpack.c.l.b16 %v467
        %v532 = vunpack.c.l.b16 %v468
        %v533 = vunpack.c.l.b16 %v469
        %v534 = vunpack.c.l.b16 %v470
        %v535 = vunpack.c.l.b16 %v471
        %v536 = vunpack.c.l.b16 %v472
        %v537 = vpack.c.b16 %v530, %v529
        %v538 = vpack.c.b16 %v532, %v531
        %v539 = vpack.c.b16 %v534, %v533
        %v540 = vpack.c.b16 %v536, %v535
        %vm541 = vcmask 588800
        %v543 = vsel %vm541, %v537, 0
        %v546 = vsel %vm541, %v538, 0
        %v549 = vsel %vm541, %v539, 0
        %v552 = vsel %vm541, %v540, 0
        %vm554 = vcmask 1043456
        %v556 = vsel %vm554, %v463, 0
        %v559 = vsel %vm554, %v464, 0
        %561 = vmatprep.subr.bf16.mxu0 0
        %562 = vmatpush1.bf16.msra.mxu0 0
        %563 = vmatprep.subr.bf16.mxu0 0
        %564 = vmatpush1.bf16.msra.mxu0 0
        %565 = vmatprep.subr.bf16.mxu0 0
        %566 = vmatpush1.bf16.msra.mxu0 0
        %567 = vmatprep.subr.bf16.mxu0 %v559
        %568 = vmatpush1.bf16.msra.mxu0 %v556
        %569 = vmatprep.subr.bf16.mxu0 %v462
        %570 = vmatpush1.bf16.msra.mxu0 %v461
        %571 = vmatprep.subr.bf16.mxu0 %v460
        %572 = vmatpush1.bf16.msra.mxu0 %v459
        %573 = vmatprep.subr.bf16.mxu0 %v458
        %574 = vmatpush1.bf16.msra.mxu0 %v457
        %575 = vmatprep.subr.bf16.mxu0 %v456
        %576 = vmatpush1.bf16.msra.mxu0 %v455
        %577 = vmatprep.subr.bf16.mxu0 0
        %578 = vmatpush2.bf16.msra.mxu0 0
        %579 = vmatprep.subr.bf16.mxu0 0
        %580 = vmatpush2.bf16.msra.mxu0 0
        %581 = vmatprep.subr.bf16.mxu0 0
        %582 = vmatpush2.bf16.msra.mxu0 0
        %583 = vmatprep.subr.bf16.mxu0 0
        %584 = vmatpush2.bf16.msra.mxu0 0
        %585 = vmatprep.subr.bf16.mxu0 0
        %586 = vmatpush2.bf16.msra.mxu0 0
        %587 = vmatprep.subr.bf16.mxu0 0
        %588 = vmatpush2.bf16.msra.mxu0 0
        %589 = vmatprep.subr.bf16.mxu0 0
        %590 = vmatpush2.bf16.msra.mxu0 0
        %591 = vmatprep.subr.bf16.mxu0 0
        %592 = vmatpush2.bf16.msra.mxu0 0
        %593 = vmatprep.mubr.bf16.mxu0 0
        %594 = vmatmul.mubr.bf16.gmra.mxu0 %v543
        %v595 = vpop.f32.mrf.mxu0
        %v596 = vadd.f32 %v484, %v595
        %v597 = vpop.f32.mrf.mxu0
        %v598 = vadd.f32 %v484, %v597
        %v599 = vpop.f32.mrf.mxu0
        %v600 = vadd.f32 %v489, %v599
        %v601 = vpop.f32.mrf.mxu0
        %v602 = vadd.f32 %v489, %v601
        %603 = vmatprep.mubr.bf16.mxu0 0
        %604 = vmatmul.mubr.bf16.gmra.mxu0 %v546
        %v605 = vpop.f32.mrf.mxu0
        %v606 = vadd.f32 %v494, %v605
        %v607 = vpop.f32.mrf.mxu0
        %v608 = vadd.f32 %v494, %v607
        %v609 = vpop.f32.mrf.mxu0
        %v610 = vadd.f32 %v499, %v609
        %v611 = vpop.f32.mrf.mxu0
        %v612 = vadd.f32 %v499, %v611
        %613 = vmatprep.mubr.bf16.mxu0 0
        %614 = vmatmul.mubr.bf16.gmra.mxu0 %v549
        %v615 = vpop.f32.mrf.mxu0
        %v616 = vadd.f32 %v504, %v615
        %v617 = vpop.f32.mrf.mxu0
        %v618 = vadd.f32 %v504, %v617
        %v619 = vpop.f32.mrf.mxu0
        %v620 = vadd.f32 %v509, %v619
        %v621 = vpop.f32.mrf.mxu0
        %v622 = vadd.f32 %v509, %v621
        %623 = vmatprep.mubr.bf16.mxu0 0
        %624 = vmatmul.mubr.bf16.gmra.mxu0 %v552
        %v625 = vpop.f32.mrf.mxu0
        %v626 = vadd.f32 %v514, %v625
        %v627 = vpop.f32.mrf.mxu0
        %v628 = vadd.f32 %v514, %v627
        %v629 = vpop.f32.mrf.mxu0
        %v630 = vadd.f32 %v519, %v629
        %v631 = vpop.f32.mrf.mxu0
        %v632 = vadd.f32 %v519, %v631
        %633 = vdwg.mxu0
        %v634 = vmax.f32 %v596, 0.0
        %v635 = vmax.f32 %v598, 0.0
        %v636 = vmax.f32 %v600, 0.0
        %v637 = vmax.f32 %v602, 0.0
        %v638 = vmax.f32 %v606, 0.0
        %v639 = vmax.f32 %v608, 0.0
        %v640 = vmax.f32 %v610, 0.0
        %v641 = vmax.f32 %v612, 0.0
        %v642 = vmax.f32 %v616, 0.0
        %v643 = vmax.f32 %v618, 0.0
        %v644 = vmax.f32 %v620, 0.0
        %v645 = vmax.f32 %v622, 0.0
        %v646 = vmax.f32 %v626, 0.0
        %v647 = vmax.f32 %v628, 0.0
        %v648 = vmax.f32 %v630, 0.0
        %v649 = vmax.f32 %v632, 0.0
        %v650 = vpack.c.bf16 %v636, %v634
        %v651 = vpack.c.bf16 %v637, %v635
        %v652 = vpack.c.bf16 %v640, %v638
        %v653 = vpack.c.bf16 %v641, %v639
        %v654 = vld [vmem:[%s3] sm:$0xf]
        %v655 = vld [vmem:[%s3 + $0x4] sm:$0xf]
        %v656 = vld [vmem:[%s4] sm:$0xff]
        %v657 = vld [vmem:[%s4 + $0x8] sm:$0xff]
        %659 = vset.pattern.permute.xlu0 0
        %660 = vperm.xlu0 %659, %v656
        %v661 = vpop.permute.xlu0 %660
        %664 = vset.pattern.permute.xlu0 0
        %665 = vperm.xlu0 %664, %v657
        %v666 = vpop.permute.xlu0 %665
        %v670 = vunpack.c.l.b16 %v654
        %v671 = vunpack.c.l.b16 %v655
        %v672 = vpack.c.b16 %v671, %v670
        %vm673 = vcmask 261120
        %v675 = vsel %vm673, %v672, 0
        %677 = vmatprep.subr.bf16.mxu0 0
        %678 = vmatpush1.bf16.msra.mxu0 0
        %679 = vmatprep.subr.bf16.mxu0 0
        %680 = vmatpush1.bf16.msra.mxu0 0
        %681 = vmatprep.subr.bf16.mxu0 0
        %682 = vmatpush1.bf16.msra.mxu0 0
        %683 = vmatprep.subr.bf16.mxu0 0
        %684 = vmatpush1.bf16.msra.mxu0 0
        %685 = vmatprep.subr.bf16.mxu0 0
        %686 = vmatpush1.bf16.msra.mxu0 0
        %687 = vmatprep.subr.bf16.mxu0 0
        %688 = vmatpush1.bf16.msra.mxu0 0
        %689 = vmatprep.subr.bf16.mxu0 %v653
        %690 = vmatpush1.bf16.msra.mxu0 %v652
        %691 = vmatprep.subr.bf16.mxu0 %v651
        %692 = vmatpush1.bf16.msra.mxu0 %v650
        %693 = vmatprep.subr.bf16.mxu0 0
        %694 = vmatpush2.bf16.msra.mxu0 0
        %695 = vmatprep.subr.bf16.mxu0 0
        %696 = vmatpush2.bf16.msra.mxu0 0
        %697 = vmatprep.subr.bf16.mxu0 0
        %698 = vmatpush2.bf16.msra.mxu0 0
        %699 = vmatprep.subr.bf16.mxu0 0
        %700 = vmatpush2.bf16.msra.mxu0 0
        %701 = vmatprep.subr.bf16.mxu0 0
        %702 = vmatpush2.bf16.msra.mxu0 0
        %703 = vmatprep.subr.bf16.mxu0 0
        %704 = vmatpush2.bf16.msra.mxu0 0
        %705 = vmatprep.subr.bf16.mxu0 0
        %706 = vmatpush2.bf16.msra.mxu0 0
        %707 = vmatprep.subr.bf16.mxu0 0
        %708 = vmatpush2.bf16.msra.mxu0 0
        %709 = vmatprep.mubr.bf16.mxu0 0
        %710 = vmatmul.mubr.bf16.gmra.mxu0 %v675
        %v711 = vpop.f32.mrf.mxu0
        %v712 = vadd.f32 %v661, %v711
        %v713 = vpop.f32.mrf.mxu0
        %v714 = vadd.f32 %v661, %v713
        %v715 = vpop.f32.mrf.mxu0
        %v716 = vadd.f32 %v666, %v715
        %v717 = vpop.f32.mrf.mxu0
        %v718 = vadd.f32 %v666, %v717
        %719 = vdwg.mxu0
        %720 = vst [vmem:[%s241] sm:$0xff] %v712
        %721 = vst [vmem:[%s241 + $0x8] sm:$0xff] %v714
        %v722 = vadd.f32 %v716, %v718
        %723 = vadd.xlane.f32.xlu0 %v722
        %v724 = vpop.xlane.xlu0 %723
        %v725 = vrcp.pop 256.0
        %v726 = vmul.f32 %v724, %v725
        %727 = vst.msk [vmem:[%s247] sm:$0xff] %vm342, %v726
        %v728 = vpack.c.bf16 %v644, %v642
        %v729 = vpack.c.bf16 %v645, %v643
        %v730 = vpack.c.bf16 %v648, %v646
        %v731 = vpack.c.bf16 %v649, %v647
        %s732 = scalar_lea.vmem %s3, 8
        %v733 = vld [vmem:[%s732] sm:$0xf]
        %v734 = vld [vmem:[%s732 + $0x4] sm:$0xf]
        %s735 = scalar_lea.vmem %s4, 16
        %v736 = vld [vmem:[%s735] sm:$0xff]
        %v737 = vld [vmem:[%s735 + $0x8] sm:$0xff]
        %739 = vset.pattern.permute.xlu0 0
        %740 = vperm.xlu0 %739, %v736
        %v741 = vpop.permute.xlu0 %740
        %744 = vset.pattern.permute.xlu0 0
        %745 = vperm.xlu0 %744, %v737
        %v746 = vpop.permute.xlu0 %745
        %v750 = vunpack.c.l.b16 %v733
        %v751 = vunpack.c.l.b16 %v734
        %v752 = vpack.c.b16 %v751, %v750
        %v754 = vsel %vm673, %v752, 0
        %756 = vmatprep.subr.bf16.mxu0 0
        %757 = vmatpush1.bf16.msra.mxu0 0
        %758 = vmatprep.subr.bf16.mxu0 0
        %759 = vmatpush1.bf16.msra.mxu0 0
        %760 = vmatprep.subr.bf16.mxu0 0
        %761 = vmatpush1.bf16.msra.mxu0 0
        %762 = vmatprep.subr.bf16.mxu0 0
        %763 = vmatpush1.bf16.msra.mxu0 0
        %764 = vmatprep.subr.bf16.mxu0 0
        %765 = vmatpush1.bf16.msra.mxu0 0
        %766 = vmatprep.subr.bf16.mxu0 0
        %767 = vmatpush1.bf16.msra.mxu0 0
        %768 = vmatprep.subr.bf16.mxu0 %v731
        %769 = vmatpush1.bf16.msra.mxu0 %v730
        %770 = vmatprep.subr.bf16.mxu0 %v729
        %771 = vmatpush1.bf16.msra.mxu0 %v728
        %772 = vmatprep.subr.bf16.mxu0 0
        %773 = vmatpush2.bf16.msra.mxu0 0
        %774 = vmatprep.subr.bf16.mxu0 0
        %775 = vmatpush2.bf16.msra.mxu0 0
        %776 = vmatprep.subr.bf16.mxu0 0
        %777 = vmatpush2.bf16.msra.mxu0 0
        %778 = vmatprep.subr.bf16.mxu0 0
        %779 = vmatpush2.bf16.msra.mxu0 0
        %780 = vmatprep.subr.bf16.mxu0 0
        %781 = vmatpush2.bf16.msra.mxu0 0
        %782 = vmatprep.subr.bf16.mxu0 0
        %783 = vmatpush2.bf16.msra.mxu0 0
        %784 = vmatprep.subr.bf16.mxu0 0
        %785 = vmatpush2.bf16.msra.mxu0 0
        %786 = vmatprep.subr.bf16.mxu0 0
        %787 = vmatpush2.bf16.msra.mxu0 0
        %788 = vmatprep.mubr.bf16.mxu0 0
        %789 = vmatmul.mubr.bf16.gmra.mxu0 %v754
        %v790 = vpop.f32.mrf.mxu0
        %v791 = vadd.f32 %v741, %v790
        %v792 = vpop.f32.mrf.mxu0
        %v793 = vadd.f32 %v741, %v792
        %v794 = vpop.f32.mrf.mxu0
        %v795 = vadd.f32 %v746, %v794
        %v796 = vpop.f32.mrf.mxu0
        %v797 = vadd.f32 %v746, %v796
        %798 = vdwg.mxu0
        %s799 = scalar_lea.vmem %s241, 16 [#allocation4]
        %800 = vst [vmem:[%s799] sm:$0xff] %v791
        %801 = vst [vmem:[%s799 + $0x8] sm:$0xff] %v793
        %v802 = vadd.f32 %v795, %v797
        %803 = vadd.xlane.f32.xlu0 %v802
        %v804 = vpop.xlane.xlu0 %803
        %v805 = vmul.f32 %v804, %v725
        %s806 = scalar_lea.vmem %s247, 8 [#allocation5]
        %807 = vst.msk [vmem:[%s806] sm:$0xff] %vm342, %v805
        %s808 = sand.u32 %s136, 1
        %s809 = sand.u32 %s136, 1
        %s810 = smul.addr %s809, 32
        %s811 = scalar_lea.vmem [#allocation4], %s810
        %s812 = sand.u32 %s162, 1
        %s813 = sand.u32 %s162, 1
        %s814 = smul.addr %s813, 16
        %s815 = scalar_lea.vmem [#allocation5], %s814
        // Predicated region
        $region41: #{mean_teacher_pair_forward.1} parent=39 // pred_check
          %p816 = pneg %p146
        $region42: #{mean_teacher_pair_forward.1} parent=39 // pred_check_branch
          %818 = sbr.rel (%p816) target = $region44
        $region43: #{mean_teacher_pair_forward.1} parent=39 // pred_region
          %s819 = smul.addr %s18, 2
          %s820 = smul.addr %s819, 8
          %s821 = scalar_lea.vmem %s5, %s820
          // Predicated region
          $region45: #{mean_teacher_pair_forward.1} parent=43 // pred_check
            _
          $region46: #{mean_teacher_pair_forward.1} parent=43 // pred_check_branch
            %823 = sbr.rel (0) target = $region48
          $region47: #{mean_teacher_pair_forward.1} parent=43 // pred_region
            // Predicated region
            $region49: #{mean_teacher_pair_forward.1} parent=47 // pred_check
              _
            $region50: #{mean_teacher_pair_forward.1} parent=47 // pred_check_branch
              %825 = sbr.rel (0) target = $region52
            $region51: #{mean_teacher_pair_forward.1} parent=47 // pred_region
              loop: start=0, step=1, limit=1
              $region53: #{mean_teacher_pair_forward.1} parent=51 // loop_pre_header
                _
              $region54: #{mean_teacher_pair_forward.1} parent=51 // loop_header
                %s827 = sphi 0, %s831
                %p828 = scmp.ge.s32.totalorder %s827, 1
                %s832 = sphi %s811, %s811
                %s833 = sphi %s821, %s821
              $region55: #{mean_teacher_pair_forward.1} parent=51 // loop_header_branch
                %830 = sbr.rel (%p828) target = $region59
              $region56: #{mean_teacher_pair_forward.1} parent=51 // loop_body
                %v834 = vld [vmem:[%s832] sm:$0xff]
                %835 = vst [vmem:[%s833] sm:$0xff] %v834
                %v836 = vld [vmem:[%s832 + $0x8] sm:$0xff]
                %837 = vst [vmem:[%s833 + $0x8] sm:$0xff] %v836
                %v838 = vld [vmem:[%s832 + $0x10] sm:$0xff]
                %839 = vst [vmem:[%s833 + $0x20] sm:$0xff] %v838
                %v840 = vld [vmem:[%s832 + $0x18] sm:$0xff]
                %841 = vst [vmem:[%s833 + $0x28] sm:$0xff] %v840
              $region57: #{mean_teacher_pair_forward.1} parent=51 // loop_footer
                %s831 = sadd.s32 1, %s827
              $region58: #{mean_teacher_pair_forward.1} parent=51 // loop_footer_branch
                %826 = sbr.rel target = $region54
              $region59: #{mean_teacher_pair_forward.1} parent=51 // loop_exit
                _
            $region52: #{mean_teacher_pair_forward.1} parent=47 // pred_fallthru
              _
            // Predicated region
            $region60: #{mean_teacher_pair_forward.1} parent=47 // pred_check
              _
            $region61: #{mean_teacher_pair_forward.1} parent=47 // pred_check_branch
              %843 = sbr.rel target = $region63
            $region62: #{mean_teacher_pair_forward.1} parent=47 // pred_region
              _
            $region63: #{mean_teacher_pair_forward.1} parent=47 // pred_fallthru
              _
          $region48: #{mean_teacher_pair_forward.1} parent=43 // pred_fallthru
            _
          %844 = vnop
        $region44: #{mean_teacher_pair_forward.1} parent=39 // pred_fallthru
          _
        // Predicated region
        $region64: #{mean_teacher_pair_forward.1} parent=39 // pred_check
          %p845 = pneg %p172
        $region65: #{mean_teacher_pair_forward.1} parent=39 // pred_check_branch
          %847 = sbr.rel (%p845) target = $region67
        $region66: #{mean_teacher_pair_forward.1} parent=39 // pred_region
          %s848 = smul.addr %s18, 8
          %s849 = scalar_lea.vmem %s6, %s848
          // Predicated region
          $region68: #{mean_teacher_pair_forward.1} parent=66 // pred_check
            _
          $region69: #{mean_teacher_pair_forward.1} parent=66 // pred_check_branch
            %851 = sbr.rel (0) target = $region71
          $region70: #{mean_teacher_pair_forward.1} parent=66 // pred_region
            // Predicated region
            $region72: #{mean_teacher_pair_forward.1} parent=70 // pred_check
              _
            $region73: #{mean_teacher_pair_forward.1} parent=70 // pred_check_branch
              %853 = sbr.rel (0) target = $region75
            $region74: #{mean_teacher_pair_forward.1} parent=70 // pred_region
              // Predicated region
              $region87: #{mean_teacher_pair_forward.1} parent=74 // pred_check
                _
              $region88: #{mean_teacher_pair_forward.1} parent=74 // pred_check_branch
                %871 = sbr.rel (0) target = $region90
              $region89: #{mean_teacher_pair_forward.1} parent=74 // pred_region
                loop: start=0, step=1, limit=1
                $region91: #{mean_teacher_pair_forward.1} parent=89 // loop_pre_header
                  _
                $region92: #{mean_teacher_pair_forward.1} parent=89 // loop_header
                  %s873 = sphi 0, %s877
                  %p874 = scmp.ge.s32.totalorder %s873, 1
                  %s878 = sphi %s815, %s815
                  %s879 = sphi %s849, %s849
                $region93: #{mean_teacher_pair_forward.1} parent=89 // loop_header_branch
                  %876 = sbr.rel (%p874) target = $region97
                $region94: #{mean_teacher_pair_forward.1} parent=89 // loop_body
                  %v880 = vld [vmem:[%s878] sm:$0xff]
                  %881 = vst [vmem:[%s879] sm:$0xff] %v880
                  %v882 = vld [vmem:[%s878 + $0x8] sm:$0xff]
                  %883 = vst [vmem:[%s879 + $0x10] sm:$0xff] %v882
                $region95: #{mean_teacher_pair_forward.1} parent=89 // loop_footer
                  %s877 = sadd.s32 1, %s873
                $region96: #{mean_teacher_pair_forward.1} parent=89 // loop_footer_branch
                  %872 = sbr.rel target = $region92
                $region97: #{mean_teacher_pair_forward.1} parent=89 // loop_exit
                  _
              $region90: #{mean_teacher_pair_forward.1} parent=74 // pred_fallthru
                _
              // Predicated region
              $region98: #{mean_teacher_pair_forward.1} parent=74 // pred_check
                _
              $region99: #{mean_teacher_pair_forward.1} parent=74 // pred_check_branch
                %885 = sbr.rel target = $region101
              $region100: #{mean_teacher_pair_forward.1} parent=74 // pred_region
                _
              $region101: #{mean_teacher_pair_forward.1} parent=74 // pred_fallthru
                _
            $region75: #{mean_teacher_pair_forward.1} parent=70 // pred_fallthru
              _
            // Predicated region
            $region76: #{mean_teacher_pair_forward.1} parent=70 // pred_check
              _
            $region77: #{mean_teacher_pair_forward.1} parent=70 // pred_check_branch
              %855 = sbr.rel target = $region79
            $region78: #{mean_teacher_pair_forward.1} parent=70 // pred_region
              %s857 = ssub.s32 256, 1
              loop: start=0, step=1, limit=1
              $region80: #{mean_teacher_pair_forward.1} parent=78 // loop_pre_header
                _
              $region81: #{mean_teacher_pair_forward.1} parent=78 // loop_header
                %s859 = sphi 0, %s863
                %p860 = scmp.ge.s32.totalorder %s859, 1
                %s864 = sphi %s815, %s815
                %s865 = sphi %s849, %s849
              $region82: #{mean_teacher_pair_forward.1} parent=78 // loop_header_branch
                %862 = sbr.rel (%p860) target = $region86
              $region83: #{mean_teacher_pair_forward.1} parent=78 // loop_body
                %v866 = vld [vmem:[%s864] sm:%s857]
                %867 = vst [vmem:[%s865] sm:%s857] %v866
                %v868 = vld [vmem:[%s864 + $0x8] sm:%s857]
                %869 = vst [vmem:[%s865 + $0x10] sm:%s857] %v868
              $region84: #{mean_teacher_pair_forward.1} parent=78 // loop_footer
                %s863 = sadd.s32 1, %s859
              $region85: #{mean_teacher_pair_forward.1} parent=78 // loop_footer_branch
                %858 = sbr.rel target = $region81
              $region86: #{mean_teacher_pair_forward.1} parent=78 // loop_exit
                _
            $region79: #{mean_teacher_pair_forward.1} parent=70 // pred_fallthru
              _
          $region71: #{mean_teacher_pair_forward.1} parent=66 // pred_fallthru
            _
          %886 = vnop
        $region67: #{mean_teacher_pair_forward.1} parent=39 // pred_fallthru
          _
      $region40: #{mean_teacher_pair_forward.1} parent=5 // pred_fallthru
        _
      %p887 = scmp.le.s32.totalorder 2, %s13
      // Predicated region
      $region102: #{mean_teacher_pair_forward.1} parent=5 // pred_check
        %p888 = pneg %p887
      $region103: #{mean_teacher_pair_forward.1} parent=5 // pred_check_branch
        %890 = sbr.rel (%p888) target = $region105
      $region104: #{mean_teacher_pair_forward.1} parent=5 // pred_region
        %s891 = ssub.s32 %s13, 2
        // Predicated region
        $region106: #{mean_teacher_pair_forward.1} parent=104 // pred_check
          %p892 = pneg %p152
        $region107: #{mean_teacher_pair_forward.1} parent=104 // pred_check_branch
          %894 = sbr.rel (%p892) target = $region109
        $region108: #{mean_teacher_pair_forward.1} parent=104 // pred_region
          %s895 = sand.u32 %s137, 1
          %s896 = sand.u32 %s137, 1
          %s897 = smul.addr %s896, 32
          %s898 = scalar_lea.vmem [#allocation4], %s897
        $region109: #{mean_teacher_pair_forward.1} parent=104 // pred_fallthru
          _
        // Predicated region
        $region110: #{mean_teacher_pair_forward.1} parent=104 // pred_check
          %p899 = pneg %p178
        $region111: #{mean_teacher_pair_forward.1} parent=104 // pred_check_branch
          %901 = sbr.rel (%p899) target = $region113
        $region112: #{mean_teacher_pair_forward.1} parent=104 // pred_region
          %s902 = sand.u32 %s163, 1
          %s903 = sand.u32 %s163, 1
          %s904 = smul.addr %s903, 16
          %s905 = scalar_lea.vmem [#allocation5], %s904
        $region113: #{mean_teacher_pair_forward.1} parent=104 // pred_fallthru
          _
      $region105: #{mean_teacher_pair_forward.1} parent=5 // pred_fallthru
        _
    $region6: #{mean_teacher_pair_forward.1} parent=1 // loop_footer
      %s17 = sadd.s32 1, %s13
    $region7: #{mean_teacher_pair_forward.1} parent=1 // loop_footer_branch
      %12 = sbr.rel target = $region3
    $region8: #{mean_teacher_pair_forward.1} parent=1 // loop_exit
      _

</llo_original>
